<compile_context>
chip_gen: v5e
topology: v5e:2x2
jax: 0.10.0
libtpu: 0.0.40
codegen_flags: <defaults>
</compile_context>

<pallas_src>
import functools
import math

import jax
import jax.numpy as jnp
import numpy as np
from jax.experimental import pallas as pl
from jax.experimental.pallas import tpu as pltpu


def _conv2d_band_kernel(x_ref, w_ref, b_ref, o_ref, *scratch, NB, H, Wc,
                        KH, pad, H_out, WoCo):
    """One grid step: NB batch elements -> (NB, H_out, W_out*C_out) output tile.

    x_ref: (NB, H, W*C_in)             lane-dense input (W and C_in packed in lanes)
    w_ref: (KH, W*C_in, W_out*C_out)   banded (Toeplitz-in-W) weight
    b_ref: (1, W_out*C_out)            bias tiled over W_out
    o_ref: (NB, H_out, W_out*C_out)    lane-dense output tile
    scratch[0] (only if pad > 0): (NB, H+2*pad, W*C_in) VMEM scratch for H padding.
    """
    if pad > 0:
        xpad_ref = scratch[0]
        # Zero ONLY the 2*pad halo rows; the interior is fully overwritten every
        # step.  Done every step (a couple of tiny stores) rather than once under
        # pl.when(program_id == 0): scratch is per-TensorCore, so an init-once
        # gate would leave garbage on the second core under 'parallel' sharding.
        zeros_halo = jnp.zeros((NB, pad, Wc), dtype=xpad_ref.dtype)
        xpad_ref[:, :pad, :] = zeros_halo
        xpad_ref[:, pad + H:, :] = zeros_halo
        xpad_ref[:, pad:pad + H, :] = x_ref[...]
        xp = xpad_ref[...]
    else:
        xp = x_ref[...]

    # The KW taps + W padding live inside the banded weight, so the conv is just
    # KH accumulating MXU matmuls over sublane-shifted row windows — no im2col
    # gather, no concatenate, no minor-dim slicing in the kernel.
    acc = jnp.zeros((NB * H_out, WoCo), jnp.float32)
    for kh in range(KH):                                   # static, tiny, unrolled
        lhs = xp[:, kh:kh + H_out, :].reshape(NB * H_out, Wc)
        acc = acc + jnp.dot(lhs, w_ref[kh], preferred_element_type=jnp.float32)
    acc = acc + b_ref[...].astype(jnp.float32)             # f32 bias epilogue (v5e-safe)
    o_ref[...] = acc.reshape(NB, H_out, WoCo).astype(o_ref.dtype)


def conv_norm_2d(x_nchw, weight_oihw, bias, *, stride=1, padding=1, dilation=1,
                 matmul_dtype=None, batch_block=None):
    """Forward of ConvNorm2D: Conv2d(C_in -> C_out, k, stride, padding, dilation, bias=True)."""
    assert stride == 1 and dilation == 1  # module defaults; see TODO above
    N, C_in, H, W = x_nchw.shape
    C_out, C_in2, KH, KW = weight_oihw.shape
    assert C_in == C_in2

    pad = int(padding)
    Hp = H + 2 * pad
    H_out = Hp - KH + 1
    W_out = W + 2 * pad - KW + 1
    Wc = W * C_in
    WoCo = W_out * C_out

    # ---- Lane-dense input packing: NCHW -> NHWC -> (N, H, W*C_in). ----
    x = jnp.transpose(x_nchw, (0, 2, 3, 1)).reshape(N, H, Wc)

    # ---- Banded (Toeplitz-in-W) weight: folds KW taps AND W zero padding into
    # the matmul.  sel[kw, w, wo] = 1 iff w == wo + kw - pad (and w in range). ----
    sel = np.zeros((KW, W, W_out), dtype=np.float32)
    for kw in range(KW):
        for wo in range(W_out):
            w_in = wo + kw - pad
            if 0 <= w_in < W:
                sel[kw, w_in, wo] = 1.0
    w_khwc = jnp.transpose(weight_oihw, (2, 3, 1, 0))                # (KH, KW, C_in, C_out)
    w_band = jnp.einsum('awv,haio->hwivo', jnp.asarray(sel), w_khwc)  # (KH, W, C_in, W_out, C_out)
    w_band = w_band.reshape(KH, Wc, WoCo)

    # Bias tiled to the lane-dense output layout (lane index = wo*C_out + co).
    b2d = jnp.tile(bias.astype(jnp.float32), W_out).reshape(1, WoCo)

    # Optional reduced-precision matmul operands (f32 accumulation) — cast once
    # in the wrapper so input DMA, scratch and matmul traffic are halved.
    if matmul_dtype is not None:
        x = x.astype(matmul_dtype)
        w_band = w_band.astype(matmul_dtype)

    in_itemsize = jnp.dtype(x.dtype).itemsize
    out_itemsize = jnp.dtype(x_nchw.dtype).itemsize

    # ---- Generation-aware VMEM budget / limit. ----
    try:
        vmem_cap = pltpu.get_tpu_info().vmem_capacity_bytes
    except Exception:
        vmem_cap = 64 * 1024 * 1024
    if vmem_cap >= 96 * 1024 * 1024:          # v5e / v6e: 128 MiB physical VMEM
        budget = 24 * 1024 * 1024
        vmem_limit = 96 * 1024 * 1024
    else:                                     # v7x: 64 MiB per TensorCore
        budget = 8 * 1024 * 1024
        vmem_limit = 48 * 1024 * 1024

    per_elem = (2 * H * Wc * in_itemsize                 # double-buffered input block
                + Hp * Wc * in_itemsize                  # padded scratch
                + 2 * H_out * WoCo * out_itemsize        # double-buffered output block
                + 2 * (H_out * Wc + H_out * WoCo) * 4)   # f32 matmul temporaries
    fixed = 2 * KH * Wc * WoCo * in_itemsize + 2 * WoCo * 4
    if batch_block is None:
        nb = max(1, min(N, (budget - fixed) // max(per_elem, 1)))
    else:
        nb = max(1, min(N, int(batch_block)))
    # Keep >= 2 grid steps whenever possible: feeds both v7x TensorCores under
    # dimension_semantics=('parallel',) and gives the pipeliner work to overlap.
    if N >= 2:
        nb = min(nb, max(1, N // 2))
    while N % nb:                              # NB must divide N
        nb -= 1
    NB = int(nb)
    grid = (N // NB,)

    kernel = functools.partial(
        _conv2d_band_kernel,
        NB=NB, H=H, Wc=Wc, KH=KH, pad=pad, H_out=H_out, WoCo=WoCo)

    flops = 2 * N * H_out * W_out * C_out * KH * KW * C_in
    bytes_accessed = (N * H * Wc * in_itemsize
                      + KH * Wc * WoCo * in_itemsize
                      + WoCo * 4
                      + N * H_out * WoCo * out_itemsize)
    cost = pl.CostEstimate(flops=int(flops), transcendentals=0,
                           bytes_accessed=int(bytes_accessed))

    in_specs = [
        pl.BlockSpec((NB, H, Wc), lambda n: (n, 0, 0)),
        pl.BlockSpec((KH, Wc, WoCo), lambda n: (0, 0, 0)),
        pl.BlockSpec((1, WoCo), lambda n: (0, 0)),
    ]
    scratch_shapes = []
    if pad > 0:
        scratch_shapes.append(pltpu.VMEM((NB, Hp, Wc), x.dtype))

    out_lane_dense = pl.pallas_call(
        kernel,
        out_shape=jax.ShapeDtypeStruct((N, H_out, WoCo), x_nchw.dtype),
        grid=grid,
        in_specs=in_specs,
        out_specs=pl.BlockSpec((NB, H_out, WoCo), lambda n: (n, 0, 0)),
        scratch_shapes=scratch_shapes,
        compiler_params=pltpu.CompilerParams(
            dimension_semantics=("parallel",),
            vmem_limit_bytes=vmem_limit),
        cost_estimate=cost,
    )(x, w_band, b2d)

    # API glue: lane-dense slab -> NHWC -> NCHW (PyTorch output convention).
    out = out_lane_dense.reshape(N, H_out, W_out, C_out)
    return jnp.transpose(out, (0, 3, 1, 2))


def init_conv_norm_2d_params(key, in_channels, out_channels, kernel_size,
                             w_init_gain="linear"):
    """Deterministic init matching ConvNorm2D.__init__ shapes + xavier_uniform_."""
    gain = 1.0  # torch.nn.init.calculate_gain('linear') == 1.0
    k1, k2 = jax.random.split(key)
    fan_in = in_channels * kernel_size * kernel_size
    fan_out = out_channels * kernel_size * kernel_size
    a = gain * math.sqrt(6.0 / (fan_in + fan_out))
    weight = jax.random.uniform(
        k1, (out_channels, in_channels, kernel_size, kernel_size),
        minval=-a, maxval=a, dtype=jnp.float32)
    bound = 1.0 / math.sqrt(fan_in)
    bias = jax.random.uniform(k2, (out_channels,),
                              minval=-bound, maxval=bound, dtype=jnp.float32)
    return weight, bias


if __name__ == "__main__":
    key = jax.random.PRNGKey(0)
    kx, kp = jax.random.split(key)

    # Small shapes consistent with the module: Conv2d(4 -> 8, k=3, pad=1).
    N, C_in, H, W = 2, 4, 16, 16
    C_out, K = 8, 3

    x = jax.random.normal(kx, (N, C_in, H, W), dtype=jnp.float32)
    weight, bias = init_conv_norm_2d_params(kp, C_in, C_out, K)

    out = conv_norm_2d(x, weight, bias, stride=1, padding=1, dilation=1)
    out = jax.block_until_ready(out)

    # Pure-JAX reference for correctness.
    ref = jax.lax.conv_general_dilated(
        x, weight, window_strides=(1, 1), padding=((1, 1), (1, 1)),
        dimension_numbers=("NCHW", "OIHW", "NCHW"),
    ) + bias[None, :, None, None]
    assert out.shape == (N, C_out, H, W)
    assert jnp.allclose(out, ref, atol=1e-4, rtol=1e-4)

    print("KERNEL_OK")
</pallas_src>

<mosaic_0001>
module attributes {stable_mosaic.version = 11 : i64} {
  func.func @_conv2d_band_kernel(%arg0: i32, %arg1: memref<1x16x64xf32, #tpu.memory_space<vmem>>, %arg2: memref<3x64x128xf32, #tpu.memory_space<vmem>>, %arg3: memref<1x128xf32, #tpu.memory_space<vmem>>, %arg4: memref<1x16x128xf32, #tpu.memory_space<vmem>>, %arg5: memref<1x18x64xf32, #tpu.memory_space<vmem>>) attributes {dimension_semantics = [#tpu.dimension_semantics<parallel>], iteration_bounds = array<i64: 2>, scalar_prefetch = 0 : i64, scratch_operands = 1 : i64, tpu.core_type = #tpu.core_type<tc>, window_params = [{transform_indices = @transform_0, window_bounds = array<i64: 1, 16, 64>}, {pipeline_mode = #tpu.pipeline_mode<synchronous>, transform_indices = @transform_1, window_bounds = array<i64: 3, 64, 128>}, {pipeline_mode = #tpu.pipeline_mode<synchronous>, transform_indices = @transform_2, window_bounds = array<i64: 1, 128>}, {transform_indices = @transform_3, window_bounds = array<i64: 1, 16, 128>}]} {
    %cst = arith.constant 0.000000e+00 : f32
    %0 = vector.broadcast %cst : f32 to vector<1x1x64xf32>
    %c0 = arith.constant 0 : index
    %c0_0 = arith.constant 0 : index
    %c0_1 = arith.constant 0 : index
    %1 = vector.load %arg5[%c0, %c0_0, %c0_1] : memref<1x18x64xf32, #tpu.memory_space<vmem>>, vector<1x1x64xf32>
    tpu.vector_store %arg5[%c0, %c0_0, %c0_1], %0 {strides = array<i32>} : memref<1x18x64xf32, #tpu.memory_space<vmem>>, vector<1x1x64xf32>,
    %c0_2 = arith.constant 0 : index
    %c17 = arith.constant 17 : index
    %c0_3 = arith.constant 0 : index
    %2 = vector.load %arg5[%c0_2, %c17, %c0_3] : memref<1x18x64xf32, #tpu.memory_space<vmem>>, vector<1x1x64xf32>
    tpu.vector_store %arg5[%c0_2, %c17, %c0_3], %0 {strides = array<i32>} : memref<1x18x64xf32, #tpu.memory_space<vmem>>, vector<1x1x64xf32>,
    %c0_4 = arith.constant 0 : index
    %c0_5 = arith.constant 0 : index
    %c0_6 = arith.constant 0 : index
    %3 = vector.load %arg1[%c0_4, %c0_5, %c0_6] : memref<1x16x64xf32, #tpu.memory_space<vmem>>, vector<1x16x64xf32>
    %c0_7 = arith.constant 0 : index
    %c1 = arith.constant 1 : index
    %c0_8 = arith.constant 0 : index
    %4 = vector.load %arg5[%c0_7, %c1, %c0_8] : memref<1x18x64xf32, #tpu.memory_space<vmem>>, vector<1x16x64xf32>
    tpu.vector_store %arg5[%c0_7, %c1, %c0_8], %3 {strides = array<i32>} : memref<1x18x64xf32, #tpu.memory_space<vmem>>, vector<1x16x64xf32>,
    %c0_9 = arith.constant 0 : index
    %c0_10 = arith.constant 0 : index
    %c0_11 = arith.constant 0 : index
    %5 = vector.load %arg5[%c0_9, %c0_10, %c0_11] : memref<1x18x64xf32, #tpu.memory_space<vmem>>, vector<1x18x64xf32>
    %cst_12 = arith.constant 0.000000e+00 : f32
    %6 = vector.broadcast %cst_12 : f32 to vector<16x128xf32>
    %7 = vector.extract_strided_slice %5 {offsets = [0, 0, 0], sizes = [1, 16, 64], strides = [1, 1, 1]} : vector<1x18x64xf32> to vector<1x16x64xf32>
    %8 = vector.shape_cast %7 : vector<1x16x64xf32> to vector<16x64xf32>
    %c0_13 = arith.constant 0 : index
    %c0_14 = arith.constant 0 : index
    %c0_15 = arith.constant 0 : index
    %9 = vector.load %arg2[%c0_13, %c0_14, %c0_15] : memref<3x64x128xf32, #tpu.memory_space<vmem>>, vector<1x64x128xf32>
    %10 = vector.shape_cast %9 : vector<1x64x128xf32> to vector<64x128xf32>
    %cst_16 = arith.constant dense<0.000000e+00> : vector<16x128xf32>
    %11 = tpu.matmul %8, %10, %cst_16 {dimension_numbers = #tpu.dot_dimension_numbers<[1], [0], [0], [1], [0, 0, 1, 1], [], []>} : vector<16x64xf32>, vector<64x128xf32>, vector<16x128xf32> -> vector<16x128xf32>
    %12 = arith.addf %6, %11 : vector<16x128xf32>
    %13 = vector.extract_strided_slice %5 {offsets = [0, 1, 0], sizes = [1, 16, 64], strides = [1, 1, 1]} : vector<1x18x64xf32> to vector<1x16x64xf32>
    %14 = vector.shape_cast %13 : vector<1x16x64xf32> to vector<16x64xf32>
    %c1_17 = arith.constant 1 : index
    %c0_18 = arith.constant 0 : index
    %c0_19 = arith.constant 0 : index
    %15 = vector.load %arg2[%c1_17, %c0_18, %c0_19] : memref<3x64x128xf32, #tpu.memory_space<vmem>>, vector<1x64x128xf32>
    %16 = vector.shape_cast %15 : vector<1x64x128xf32> to vector<64x128xf32>
    %cst_20 = arith.constant dense<0.000000e+00> : vector<16x128xf32>
    %17 = tpu.matmul %14, %16, %cst_20 {dimension_numbers = #tpu.dot_dimension_numbers<[1], [0], [0], [1], [0, 0, 1, 1], [], []>} : vector<16x64xf32>, vector<64x128xf32>, vector<16x128xf32> -> vector<16x128xf32>
    %18 = arith.addf %12, %17 : vector<16x128xf32>
    %19 = vector.extract_strided_slice %5 {offsets = [0, 2, 0], sizes = [1, 16, 64], strides = [1, 1, 1]} : vector<1x18x64xf32> to vector<1x16x64xf32>
    %20 = vector.shape_cast %19 : vector<1x16x64xf32> to vector<16x64xf32>
    %c2 = arith.constant 2 : index
    %c0_21 = arith.constant 0 : index
    %c0_22 = arith.constant 0 : index
    %21 = vector.load %arg2[%c2, %c0_21, %c0_22] : memref<3x64x128xf32, #tpu.memory_space<vmem>>, vector<1x64x128xf32>
    %22 = vector.shape_cast %21 : vector<1x64x128xf32> to vector<64x128xf32>
    %cst_23 = arith.constant dense<0.000000e+00> : vector<16x128xf32>
    %23 = tpu.matmul %20, %22, %cst_23 {dimension_numbers = #tpu.dot_dimension_numbers<[1], [0], [0], [1], [0, 0, 1, 1], [], []>} : vector<16x64xf32>, vector<64x128xf32>, vector<16x128xf32> -> vector<16x128xf32>
    %24 = arith.addf %18, %23 : vector<16x128xf32>
    %c0_24 = arith.constant 0 : index
    %c0_25 = arith.constant 0 : index
    %25 = vector.load %arg3[%c0_24, %c0_25] : memref<1x128xf32, #tpu.memory_space<vmem>>, vector<1x128xf32>
    %26 = vector.broadcast %25 : vector<1x128xf32> to vector<16x128xf32>
    %27 = arith.addf %24, %26 : vector<16x128xf32>
    %28 = vector.shape_cast %27 : vector<16x128xf32> to vector<1x16x128xf32>
    %c0_26 = arith.constant 0 : index
    %c0_27 = arith.constant 0 : index
    %c0_28 = arith.constant 0 : index
    %29 = vector.load %arg4[%c0_26, %c0_27, %c0_28] : memref<1x16x128xf32, #tpu.memory_space<vmem>>, vector<1x16x128xf32>
    tpu.vector_store %arg4[%c0_26, %c0_27, %c0_28], %28 {strides = array<i32>} : memref<1x16x128xf32, #tpu.memory_space<vmem>>, vector<1x16x128xf32>,
    return
  }
  func.func @transform_0(%arg0: i32) -> (i32, i32, i32) {
    %c0_i32 = arith.constant 0 : i32
    %c0_i32_0 = arith.constant 0 : i32
    %c0_i32_1 = arith.constant 0 : i32
    return %arg0, %c0_i32, %c0_i32_0 : i32, i32, i32
  }
  func.func @transform_1(%arg0: i32) -> (i32, i32, i32) {
    %c0_i32 = arith.constant 0 : i32
    %c0_i32_0 = arith.constant 0 : i32
    %c0_i32_1 = arith.constant 0 : i32
    %c0_i32_2 = arith.constant 0 : i32
    return %c0_i32, %c0_i32_0, %c0_i32_1 : i32, i32, i32
  }
  func.func @transform_2(%arg0: i32) -> (i32, i32) {
    %c0_i32 = arith.constant 0 : i32
    %c0_i32_0 = arith.constant 0 : i32
    %c0_i32_1 = arith.constant 0 : i32
    return %c0_i32, %c0_i32_0 : i32, i32
  }
  func.func @transform_3(%arg0: i32) -> (i32, i32, i32) {
    %c0_i32 = arith.constant 0 : i32
    %c0_i32_0 = arith.constant 0 : i32
    %c0_i32_1 = arith.constant 0 : i32
    return %arg0, %c0_i32, %c0_i32_0 : i32, i32, i32
  }
}

</mosaic_0001>

<llo_original>
// kernel: tpu_custom_call.1
$region0: #{tpu_custom_call.1}
  #allocation0 [shape = 'u32[]', space=smem, size = 0x4, offset = 0x4, fixed_abs, tag = 'smem constant byte address 0x4 - core index']
  #allocation1 [shape = 'u32[72,128]{1,0:T(1,128)}', space=vmem, size = 0x9000, scoped, tag = 'internal scratch']
  #allocation2 [shape = 'f32[1,18,64]{2,1,0:T(8,128)}', space=vmem, size = 0x3000, scoped, tag = 'scratch operand']
  %s0 = inlined_call_operand.hbm [shape: f32[2,16,64], index: 0, kind: input, shape index: {}]
  %s1 = inlined_call_operand.hbm [shape: f32[3,64,128], index: 1, kind: input, shape index: {}]
  %s2 = inlined_call_operand.vmem [shape: f32[1,128], index: 2, kind: input, shape index: {}]
  %s3 = inlined_call_operand.hbm [shape: f32[2,16,128], index: 3, kind: output, shape index: {}]
  %s4 = sld [smem:[#allocation0]]
  $region53: #{tpu_custom_call.1} parent=0
    _
  %s6 = ssub.s32 1, %s4
  %s7 = scalar_select 0, %s6, %s4
  $region1: #{tpu_custom_call.1} parent=0
    #allocation3 [shape = 'u8[16384]{0}', space=vmem, size = 0x4000, scoped, tag = 'input window, operand 0']
    #allocation4 [shape = 's32[2]{0}', space=sflag, size = 0x8, scoped, tag = 'scoped memory for tpu_custom_call.1']
    #allocation5 [shape = 's32[2]{0}', space=sflag, size = 0x8, scoped, tag = 'scoped memory for tpu_custom_call.1']
    #allocation6 [shape = 'u8[98304]{0}', space=vmem, size = 0x18000, scoped, tag = 'input window, operand 1, single buffered']
    #allocation7 [shape = 's32[1]{0}', space=sflag, size = 0x4, scoped, tag = 'scoped memory for tpu_custom_call.1']
    #allocation8 [shape = 'u8[16384]{0}', space=vmem, size = 0x4000, scoped, tag = 'output window, operand 0']
    %8 = vsyncpa [#allocation4], 0
    %s9 = scalar_lea.sflag [#allocation4], 1
    %10 = vsyncpa %s9, 0
    %11 = vsyncpa [#allocation7], 0
    %12 = vsyncpa [#allocation5], 0
    %s13 = scalar_lea.sflag [#allocation5], 1
    %14 = vsyncpa %s13, 0
    loop: start=0, step=1, limit=4
    $region2: #{tpu_custom_call.1} parent=1 // loop_pre_header
      _
    $region3: #{tpu_custom_call.1} parent=1 // loop_header
      %s16 = sphi 0, %s20
      %p17 = scmp.ge.s32.totalorder %s16, 4
      %s26 = sphi 0, %s28
      %s29 = sphi 0, %s26
      %s30 = sphi 0, %s29
      %s46 = sphi 0, %s30
      %s50 = sphi 0, %s50
      %s52 = sphi 0, %s50
      %s53 = sphi 0, %s52
      %s67 = sphi 0, %s53
      %s71 = sphi 0, %s71
      %s73 = sphi 0, %s71
      %s74 = sphi 0, %s73
      %s88 = sphi 0, %s74
      %s94 = sphi 0, %s96
      %s97 = sphi 0, %s94
      %s98 = sphi 0, %s97
      %s114 = sphi 0, %s98
    $region4: #{tpu_custom_call.1} parent=1 // loop_header_branch
      %19 = sbr.rel (%p17) target = $region8
    $region5: #{tpu_custom_call.1} parent=1 // loop_body
      %s21 = ssub.s32 %s16, 1
      %s22 = ssub.s32 %s16, 2
      %s23 = sadd.s32 %s16, 1
      %s24 = ssub.s32 %s16, %s23
      %p25 = scmp.eq.s32.totalorder %s24, 0
      %s27 = sadd.s32 %s26, 1
      %s28 = scalar_select %p25, %s26, %s27
      %p31 = pneg %p25
      %p32 = scmp.eq.s32.totalorder %s16, 1
      %p33 = por %p31, %p32
      %p34 = scmp.ne.s32.totalorder %s26, %s29
      %p35 = scmp.eq.s32.totalorder %s16, 0
      %p36 = por %p34, %p35
      %p37 = scmp.ne.s32.totalorder %s26, %s29
      %p38 = scmp.eq.s32.totalorder %s21, 1
      %p39 = por %p37, %p38
      %p40 = scmp.ne.s32.totalorder %s29, %s30
      %p41 = scmp.eq.s32.totalorder %s21, 0
      %p42 = por %p40, %p41
      %p43 = scmp.ne.s32.totalorder %s29, %s30
      %p44 = scmp.eq.s32.totalorder %s22, 1
      %p45 = por %p43, %p44
      %p47 = scmp.ne.s32.totalorder %s30, %s46
      %p48 = scmp.eq.s32.totalorder %s22, 0
      %p49 = por %p47, %p48
      %s51 = sadd.s32 %s50, 1
      %p54 = scmp.eq.s32.totalorder %s16, 1
      %p55 = scmp.ne.s32.totalorder %s50, %s52
      %p56 = scmp.eq.s32.totalorder %s16, 0
      %p57 = por %p55, %p56
      %p58 = scmp.ne.s32.totalorder %s50, %s52
      %p59 = scmp.eq.s32.totalorder %s21, 1
      %p60 = por %p58, %p59
      %p61 = scmp.ne.s32.totalorder %s52, %s53
      %p62 = scmp.eq.s32.totalorder %s21, 0
      %p63 = por %p61, %p62
      %p64 = scmp.ne.s32.totalorder %s52, %s53
      %p65 = scmp.eq.s32.totalorder %s22, 1
      %p66 = por %p64, %p65
      %p68 = scmp.ne.s32.totalorder %s53, %s67
      %p69 = scmp.eq.s32.totalorder %s22, 0
      %p70 = por %p68, %p69
      %s72 = sadd.s32 %s71, 1
      %p75 = scmp.eq.s32.totalorder %s16, 1
      %p76 = scmp.ne.s32.totalorder %s71, %s73
      %p77 = scmp.eq.s32.totalorder %s16, 0
      %p78 = por %p76, %p77
      %p79 = scmp.ne.s32.totalorder %s71, %s73
      %p80 = scmp.eq.s32.totalorder %s21, 1
      %p81 = por %p79, %p80
      %p82 = scmp.ne.s32.totalorder %s73, %s74
      %p83 = scmp.eq.s32.totalorder %s21, 0
      %p84 = por %p82, %p83
      %p85 = scmp.ne.s32.totalorder %s73, %s74
      %p86 = scmp.eq.s32.totalorder %s22, 1
      %p87 = por %p85, %p86
      %p89 = scmp.ne.s32.totalorder %s74, %s88
      %p90 = scmp.eq.s32.totalorder %s22, 0
      %p91 = por %p89, %p90
      %s92 = ssub.s32 %s16, %s23
      %p93 = scmp.eq.s32.totalorder %s92, 0
      %s95 = sadd.s32 %s94, 1
      %s96 = scalar_select %p93, %s94, %s95
      %p99 = pneg %p93
      %p100 = scmp.eq.s32.totalorder %s16, 1
      %p101 = por %p99, %p100
      %p102 = scmp.ne.s32.totalorder %s94, %s97
      %p103 = scmp.eq.s32.totalorder %s16, 0
      %p104 = por %p102, %p103
      %p105 = scmp.ne.s32.totalorder %s94, %s97
      %p106 = scmp.eq.s32.totalorder %s21, 1
      %p107 = por %p105, %p106
      %p108 = scmp.ne.s32.totalorder %s97, %s98
      %p109 = scmp.eq.s32.totalorder %s21, 0
      %p110 = por %p108, %p109
      %p111 = scmp.ne.s32.totalorder %s97, %s98
      %p112 = scmp.eq.s32.totalorder %s22, 1
      %p113 = por %p111, %p112
      %p115 = scmp.ne.s32.totalorder %s98, %s114
      %p116 = scmp.eq.s32.totalorder %s22, 0
      %p117 = por %p115, %p116
      %p118 = scmp.le.s32.totalorder 1, %s16
      %p119 = scmp.lt.s32.totalorder %s16, 3
      %p120 = pnand %p118, %p119
      %p121 = pneg %p120
      // Predicated region
      $region9: #{tpu_custom_call.1} parent=5 // pred_check
        _
      $region10: #{tpu_custom_call.1} parent=5 // pred_check_branch
        %123 = sbr.rel (%p120) target = $region12
      $region11: #{tpu_custom_call.1} parent=5 // pred_region
        %s124 = ssub.s32 %s16, 1
        // Predicated region
        $region13: #{tpu_custom_call.1} parent=11 // pred_check
          %p125 = pneg %p63
        $region14: #{tpu_custom_call.1} parent=11 // pred_check_branch
          %127 = sbr.rel (%p125) target = $region16
        $region15: #{tpu_custom_call.1} parent=11 // pred_region
          %129 = vsyncadd [#allocation7], 0
          %s130 = sshll.u32 %s1, 4
          %s131 = int_to_ptr.hbm [resolvable:$true] %s130
          %s132 = sshll.u32 [#allocation6], 4
          %s133 = int_to_ptr.vmem [resolvable:$true] %s132
          %138 = dma.hbm_to_vmem [thread:$0]  %s131, 3072, %s133, [#allocation7], 128, 128, 8
        $region16: #{tpu_custom_call.1} parent=11 // pred_fallthru
          _
        // Predicated region
        $region17: #{tpu_custom_call.1} parent=11 // pred_check
          %p139 = pneg %p84
        $region18: #{tpu_custom_call.1} parent=11 // pred_check_branch
          %141 = sbr.rel (%p139) target = $region20
        $region19: #{tpu_custom_call.1} parent=11 // pred_region
          _
        $region20: #{tpu_custom_call.1} parent=11 // pred_fallthru
          _
      $region12: #{tpu_custom_call.1} parent=5 // pred_fallthru
        _
      %p142 = scmp.lt.s32.totalorder %s16, 2
      // Predicated region
      $region21: #{tpu_custom_call.1} parent=5 // pred_check
        %p143 = pneg %p142
      $region22: #{tpu_custom_call.1} parent=5 // pred_check_branch
        %145 = sbr.rel (%p143) target = $region24
      $region23: #{tpu_custom_call.1} parent=5 // pred_region
        // Predicated region
        $region25: #{tpu_custom_call.1} parent=23 // pred_check
          %p146 = pneg %p36
        $region26: #{tpu_custom_call.1} parent=23 // pred_check_branch
          %148 = sbr.rel (%p146) target = $region28
        $region27: #{tpu_custom_call.1} parent=23 // pred_region
          %s149 = sand.u32 %s26, 1
          %s150 = scalar_lea.sflag [#allocation4], %s149
          %s151 = sand.u32 %s26, 1
          %s152 = smul.addr %s151, 16
          %s153 = scalar_lea.vmem [#allocation3], %s152
          %155 = vsyncadd %s150, 0
          %s156 = smul.addr %s16, 2
          %s157 = smul.addr %s156, 8
          %s158 = scalar_lea.hbm %s0, %s157
          %s159 = sshll.u32 %s158, 4
          %s160 = int_to_ptr.hbm [resolvable:$true] %s159
          %s161 = sshll.u32 %s153, 4
          %s162 = int_to_ptr.vmem [resolvable:$true] %s161
          %167 = dma.hbm_to_vmem [thread:$0]  %s160, 256, %s162, %s150, 128, 128, 8
        $region28: #{tpu_custom_call.1} parent=23 // pred_fallthru
          _
      $region24: #{tpu_custom_call.1} parent=5 // pred_fallthru
        _
      %p168 = scmp.le.s32.totalorder 1, %s16
      %p169 = scmp.lt.s32.totalorder %s16, 3
      %p170 = pnand %p168, %p169
      %p171 = pneg %p170
      // Predicated region
      $region29: #{tpu_custom_call.1} parent=5 // pred_check
        _
      $region30: #{tpu_custom_call.1} parent=5 // pred_check_branch
        %173 = sbr.rel (%p170) target = $region32
      $region31: #{tpu_custom_call.1} parent=5 // pred_region
        %s174 = ssub.s32 %s16, 1
        %s175 = sand.u32 %s29, 1
        %s176 = scalar_lea.sflag [#allocation4], %s175
        %s177 = sand.u32 %s29, 1
        %s178 = smul.addr %s177, 16
        %s179 = scalar_lea.vmem [#allocation3], %s178
        // Predicated region
        $region33: #{tpu_custom_call.1} parent=31 // pred_check
          %p180 = pneg %p42
        $region34: #{tpu_custom_call.1} parent=31 // pred_check_branch
          %182 = sbr.rel (%p180) target = $region36
        $region35: #{tpu_custom_call.1} parent=31 // pred_region
          %184 = dma.done %s176, 256
        $region36: #{tpu_custom_call.1} parent=31 // pred_fallthru
          _
        // Predicated region
        $region37: #{tpu_custom_call.1} parent=31 // pred_check
          %p185 = pneg %p63
        $region38: #{tpu_custom_call.1} parent=31 // pred_check_branch
          %187 = sbr.rel (%p185) target = $region40
        $region39: #{tpu_custom_call.1} parent=31 // pred_region
          %189 = dma.done [#allocation7], 3072
        $region40: #{tpu_custom_call.1} parent=31 // pred_fallthru
          _
        %s190 = sand.u32 %s29, 1
        %s191 = scalar_lea.sflag [#allocation4], %s190
        %s192 = sand.u32 %s29, 1
        %s193 = smul.addr %s192, 16
        %s194 = scalar_lea.vmem [#allocation3], %s193
        %p195 = pneg %p42
        %p196 = pneg %p39
        %p197 = pneg %p63
        %p198 = pneg %p60
        %p199 = pneg %p84
        %p200 = pneg %p81
        %p201 = pneg %p110
        %p202 = pneg %p107
        %s203 = sand.u32 %s97, 1
        %s204 = scalar_lea.sflag [#allocation5], %s203
        %s205 = sand.u32 %s97, 1
        %s206 = smul.addr %s205, 16
        %s207 = scalar_lea.vmem [#allocation8], %s206
        %vm208 = vcmask 516096
        %209 = vst.msk [vmem:[#allocation2] sm:$0x1] %vm208, 0.0
        %210 = vst.msk [vmem:[#allocation2 + $0x11] sm:$0x1] %vm208, 0.0
        %v211 = vld [vmem:[%s179] sm:$0xff]
        %v212 = vld [vmem:[%s179 + $0x8] sm:$0xff]
        %vm213 = vcmask 523264
        %214 = vst.msk [vmem:[#allocation2 + $0x1] sm:$0xff] %vm213, %v211
        %215 = vst.msk [vmem:[#allocation2 + $0x9] sm:$0xff] %vm213, %v212
        %v216 = vld [vmem:[#allocation2] sm:$0xff]
        %v217 = vld [vmem:[#allocation2 + $0x8] sm:$0xff]
        %v218 = vld [vmem:[#allocation2 + $0x10] sm:$0x3]
        %v219 = vld [vmem:[#allocation6] sm:$0xff]
        %v220 = vld [vmem:[#allocation6 + $0x8] sm:$0xff]
        %v221 = vld [vmem:[#allocation6 + $0x10] sm:$0xff]
        %v222 = vld [vmem:[#allocation6 + $0x18] sm:$0xff]
        %v223 = vld [vmem:[#allocation6 + $0x20] sm:$0xff]
        %v224 = vld [vmem:[#allocation6 + $0x28] sm:$0xff]
        %v225 = vld [vmem:[#allocation6 + $0x30] sm:$0xff]
        %v226 = vld [vmem:[#allocation6 + $0x38] sm:$0xff]
        %s227 = scalar_lea.vmem [#allocation6], 64
        %v228 = vld [vmem:[%s227] sm:$0xff]
        %v229 = vld [vmem:[%s227 + $0x8] sm:$0xff]
        %v230 = vld [vmem:[%s227 + $0x10] sm:$0xff]
        %v231 = vld [vmem:[%s227 + $0x18] sm:$0xff]
        %v232 = vld [vmem:[%s227 + $0x20] sm:$0xff]
        %v233 = vld [vmem:[%s227 + $0x28] sm:$0xff]
        %v234 = vld [vmem:[%s227 + $0x30] sm:$0xff]
        %v235 = vld [vmem:[%s227 + $0x38] sm:$0xff]
        %vm239 = vcmask 1046528
        %v240 = vrot.slane %v216, 1
        %v241 = vrot.slane %v217, 1
        %v242 = vsel %vm239, %v240, %v241
        %v243 = vrot.slane %v218, 1
        %v244 = vsel %vm239, %v241, %v243
        %v245 = vsel %vm213, %v242, 0
        %v247 = vsel %vm213, %v244, 0
        %249 = vmatpush.msra.mxu0 0.0
        %250 = vmatpush.msra.mxu0 0.0
        %251 = vmatpush.msra.mxu0 0.0
        %252 = vmatpush.msra.mxu0 0.0
        %253 = vmatpush.msra.mxu0 0.0
        %254 = vmatpush.msra.mxu0 0.0
        %255 = vmatpush.msra.mxu0 0.0
        %256 = vmatpush.msra.mxu0 0.0
        %257 = vmatpush.msra.mxu0 %v235
        %258 = vmatpush.msra.mxu0 %v234
        %259 = vmatpush.msra.mxu0 %v233
        %260 = vmatpush.msra.mxu0 %v232
        %261 = vmatpush.msra.mxu0 %v231
        %262 = vmatpush.msra.mxu0 %v230
        %263 = vmatpush.msra.mxu0 %v229
        %264 = vmatpush.msra.mxu0 %v228
        %265 = vmatmul.f32.gmra.mxu0 %v245
        %v266 = vpop.f32.mrf.mxu0
        %v267 = vadd.f32 0.0, %v266
        %268 = vmatmul.f32.gmra.mxu0 %v247
        %v269 = vpop.f32.mrf.mxu0
        %v270 = vadd.f32 0.0, %v269
        %271 = vdwg.mxu0
        %v272 = vsel %vm213, %v216, 0
        %v274 = vsel %vm213, %v217, 0
        %276 = vmatpush.msra.mxu0 0.0
        %277 = vmatpush.msra.mxu0 0.0
        %278 = vmatpush.msra.mxu0 0.0
        %279 = vmatpush.msra.mxu0 0.0
        %280 = vmatpush.msra.mxu0 0.0
        %281 = vmatpush.msra.mxu0 0.0
        %282 = vmatpush.msra.mxu0 0.0
        %283 = vmatpush.msra.mxu0 0.0
        %284 = vmatpush.msra.mxu0 %v226
        %285 = vmatpush.msra.mxu0 %v225
        %286 = vmatpush.msra.mxu0 %v224
        %287 = vmatpush.msra.mxu0 %v223
        %288 = vmatpush.msra.mxu0 %v222
        %289 = vmatpush.msra.mxu0 %v221
        %290 = vmatpush.msra.mxu0 %v220
        %291 = vmatpush.msra.mxu0 %v219
        %292 = vmatmul.f32.gmra.mxu0 %v272
        %v293 = vpop.f32.mrf.mxu0
        %v294 = vadd.f32 %v267, %v293
        %295 = vmatmul.f32.gmra.mxu0 %v274
        %v296 = vpop.f32.mrf.mxu0
        %v297 = vadd.f32 %v270, %v296
        %298 = vdwg.mxu0
        %s299 = scalar_lea.vmem [#allocation6], 128
        %v300 = vld [vmem:[%s299] sm:$0xff]
        %v301 = vld [vmem:[%s299 + $0x8] sm:$0xff]
        %v302 = vld [vmem:[%s299 + $0x10] sm:$0xff]
        %v303 = vld [vmem:[%s299 + $0x18] sm:$0xff]
        %v304 = vld [vmem:[%s299 + $0x20] sm:$0xff]
        %v305 = vld [vmem:[%s299 + $0x28] sm:$0xff]
        %v306 = vld [vmem:[%s299 + $0x30] sm:$0xff]
        %v307 = vld [vmem:[%s299 + $0x38] sm:$0xff]
        %vm308 = vcmask 1045504
        %v309 = vrot.slane %v216, 2
        %v310 = vrot.slane %v217, 2
        %v311 = vsel %vm308, %v309, %v310
        %v312 = vrot.slane %v218, 2
        %v313 = vsel %vm308, %v310, %v312
        %v314 = vsel %vm213, %v311, 0
        %v316 = vsel %vm213, %v313, 0
        %318 = vmatpush.msra.mxu0 0.0
        %319 = vmatpush.msra.mxu0 0.0
        %320 = vmatpush.msra.mxu0 0.0
        %321 = vmatpush.msra.mxu0 0.0
        %322 = vmatpush.msra.mxu0 0.0
        %323 = vmatpush.msra.mxu0 0.0
        %324 = vmatpush.msra.mxu0 0.0
        %325 = vmatpush.msra.mxu0 0.0
        %326 = vmatpush.msra.mxu0 %v307
        %327 = vmatpush.msra.mxu0 %v306
        %328 = vmatpush.msra.mxu0 %v305
        %329 = vmatpush.msra.mxu0 %v304
        %330 = vmatpush.msra.mxu0 %v303
        %331 = vmatpush.msra.mxu0 %v302
        %332 = vmatpush.msra.mxu0 %v301
        %333 = vmatpush.msra.mxu0 %v300
        %334 = vmatmul.f32.gmra.mxu0 %v314
        %v335 = vpop.f32.mrf.mxu0
        %v336 = vadd.f32 0.0, %v335
        %337 = vmatmul.f32.gmra.mxu0 %v316
        %v338 = vpop.f32.mrf.mxu0
        %v339 = vadd.f32 0.0, %v338
        %340 = vdwg.mxu0
        %v341 = vadd.f32 %v294, %v336
        %v342 = vadd.f32 %v297, %v339
        %v343 = vld [vmem:[%s2] sm:$0x1]
        %v345 = vperm.slane %v343, 0
        %v347 = vadd.f32 %v341, %v345
        %v348 = vadd.f32 %v342, %v345
        %349 = vst [vmem:[%s207] sm:$0xff] %v347
        %350 = vst [vmem:[%s207 + $0x8] sm:$0xff] %v348
        %s351 = sand.u32 %s97, 1
        %s352 = scalar_lea.sflag [#allocation5], %s351
        %s353 = sand.u32 %s97, 1
        %s354 = smul.addr %s353, 16
        %s355 = scalar_lea.vmem [#allocation8], %s354
        // Predicated region
        $region41: #{tpu_custom_call.1} parent=31 // pred_check
          %p356 = pneg %p107
        $region42: #{tpu_custom_call.1} parent=31 // pred_check_branch
          %358 = sbr.rel (%p356) target = $region44
        $region43: #{tpu_custom_call.1} parent=31 // pred_region
          %360 = vsyncadd %s352, 0
          %s361 = smul.addr %s21, 2
          %s362 = smul.addr %s361, 8
          %s363 = scalar_lea.hbm %s3, %s362
          %s364 = sshll.u32 %s355, 4
          %s365 = int_to_ptr.vmem [resolvable:$true] %s364
          %s366 = sshll.u32 %s363, 4
          %s367 = int_to_ptr.hbm [resolvable:$true] %s366
          %372 = dma.vmem_to_hbm [thread:$0]  %s365, 256, %s367, %s352, 128, 128, 8
        $region44: #{tpu_custom_call.1} parent=31 // pred_fallthru
          _
      $region32: #{tpu_custom_call.1} parent=5 // pred_fallthru
        _
      %p373 = scmp.le.s32.totalorder 2, %s16
      // Predicated region
      $region45: #{tpu_custom_call.1} parent=5 // pred_check
        %p374 = pneg %p373
      $region46: #{tpu_custom_call.1} parent=5 // pred_check_branch
        %376 = sbr.rel (%p374) target = $region48
      $region47: #{tpu_custom_call.1} parent=5 // pred_region
        %s377 = ssub.s32 %s16, 2
        // Predicated region
        $region49: #{tpu_custom_call.1} parent=47 // pred_check
          %p378 = pneg %p113
        $region50: #{tpu_custom_call.1} parent=47 // pred_check_branch
          %380 = sbr.rel (%p378) target = $region52
        $region51: #{tpu_custom_call.1} parent=47 // pred_region
          %s381 = sand.u32 %s98, 1
          %s382 = scalar_lea.sflag [#allocation5], %s381
          %s383 = sand.u32 %s98, 1
          %s384 = smul.addr %s383, 16
          %s385 = scalar_lea.vmem [#allocation8], %s384
          %387 = dma.done %s382, 256
        $region52: #{tpu_custom_call.1} parent=47 // pred_fallthru
          _
      $region48: #{tpu_custom_call.1} parent=5 // pred_fallthru
        _
    $region6: #{tpu_custom_call.1} parent=1 // loop_footer
      %s20 = sadd.s32 1, %s16
    $region7: #{tpu_custom_call.1} parent=1 // loop_footer_branch
      %15 = sbr.rel target = $region3
    $region8: #{tpu_custom_call.1} parent=1 // loop_exit
      _
    %388 = vsyncpa [#allocation4], 1
    %s389 = scalar_lea.sflag [#allocation4], 1
    %390 = vsyncpa %s389, 1
    %391 = vsyncpa [#allocation7], 1
    %392 = vsyncpa [#allocation5], 1
    %s393 = scalar_lea.sflag [#allocation5], 1
    %394 = vsyncpa %s393, 1

</llo_original>
